<compile_context>
chip_gen: v5e
topology: v5e:2x2
jax: 0.10.0
libtpu: 0.0.40
codegen_flags: <defaults>
</compile_context>

<pallas_src>
from typing import NamedTuple

import jax
import jax.numpy as jnp
from jax.experimental import pallas as pl
from jax.experimental.pallas import tpu as pltpu

LANE = 128
_NEG_INF = -1e30


def _round_up(n, m):
    return ((n + m - 1) // m) * m


# --------------------------------------------------------------------------
# Kernel: one batch tile -> Linear + ReLU + Linear + log_softmax (class axis)
# --------------------------------------------------------------------------
def _mlp_kernel(x_ref, w1_ref, b1_ref, w2_ref, b2_ref, out_ref):
    # Cast the activation tile to bf16 in-register (x arrives unpadded/uncast).
    x_bf = x_ref[...].astype(jnp.bfloat16)

    # Hidden layer: bf16 MXU matmul, f32 accumulation, f32 epilogue.
    h1 = jnp.dot(x_bf, w1_ref[...], preferred_element_type=jnp.float32)
    h1 = jnp.maximum(h1 + b1_ref[...], 0.0)                 # (TB, Hp)
    # Dropout: inference-mode identity -> omitted.

    # Output layer.  Padded class columns carry a -1e30 bias (baked into b2 at
    # prep time), so no in-kernel iota/where mask is needed.
    logits = jnp.dot(h1.astype(jnp.bfloat16), w2_ref[...],
                     preferred_element_type=jnp.float32)
    logits = logits + b2_ref[...]                           # (TB, Cp) + (1, Cp)

    # log_softmax along dim=1 (class axis, last dim).
    m = jnp.max(logits, axis=-1, keepdims=True)
    shifted = logits - m
    lse = jnp.log(jnp.sum(jnp.exp(shifted), axis=-1, keepdims=True))
    out_ref[...] = (shifted - lse).astype(out_ref.dtype)


# --------------------------------------------------------------------------
# One-time parameter preparation (pad + cast, done OUTSIDE the per-call path)
# --------------------------------------------------------------------------
class PreparedParams(NamedTuple):
    w1p: jax.Array   # (D, Hp)   bf16
    b1p: jax.Array   # (1, Hp)   f32
    w2p: jax.Array   # (Hp, Cp)  bf16
    b2p: jax.Array   # (1, Cp)   f32 (padded cols = -1e30 -> class mask)
    num_class: int


def prepare_params(w1, b1, w2, b2):
    """Pad + cast the (static) weights once; reuse across forward calls.

    w1: (D, H), b1: (H,)/(1,H), w2: (H, C), b2: (C,)/(1,C), all f32
    (nn.Linear weights pre-transposed to (in_features, out_features)).
    """
    D, H = w1.shape
    C = w2.shape[1]
    Hp = _round_up(H, LANE)
    Cp = _round_up(C, LANE)
    b1 = jnp.asarray(b1, jnp.float32).reshape(1, -1)
    b2 = jnp.asarray(b2, jnp.float32).reshape(1, -1)
    # Zero padding is exact: padded hidden cols -> relu(0 + 0) = 0; padded w2
    # rows contribute nothing; padded class cols get the -1e30 bias (LSE mask).
    w1p = jnp.zeros((D, Hp), jnp.bfloat16).at[:, :H].set(w1.astype(jnp.bfloat16))
    b1p = jnp.zeros((1, Hp), jnp.float32).at[:, :H].set(b1)
    w2p = jnp.zeros((Hp, Cp), jnp.bfloat16).at[:H, :C].set(w2.astype(jnp.bfloat16))
    b2p = jnp.full((1, Cp), _NEG_INF, jnp.float32).at[:, :C].set(b2)
    return PreparedParams(w1p, b1p, w2p, b2p, C)


# --------------------------------------------------------------------------
# Tiling helpers
# --------------------------------------------------------------------------
def _pick_tb(batch):
    # Small batches: one full-extent tile (no batch padding, grid of 1).
    if batch <= 256:
        return batch
    # Large batches: ~512-row tiles, (a) grid >= 2 so ("parallel",) splits
    # across v7x's two TensorCores, (b) tile near a divisor of B so no grid
    # step is pure padding.
    n_tiles = max(2, pl.cdiv(batch, 512))
    return _round_up(pl.cdiv(batch, n_tiles), 8)


def _vmem_bytes_estimate(tb, d, hp, cp):
    """Conservative double-buffered VMEM footprint of the pallas_call."""
    dp = _round_up(max(d, 1), LANE)
    tbp = _round_up(max(tb, 1), 8)
    x_tiles = 2 * tbp * dp * 4            # f32 activation tile, double-buffered
    out_tiles = 2 * tbp * cp * 4          # f32 log-prob tile, double-buffered
    w1 = 2 * _round_up(d, 16) * hp * 2    # bf16 resident weights (2 buffers)
    w2 = 2 * hp * cp * 2
    b = 2 * 8 * (hp + cp) * 4
    return x_tiles + out_tiles + w1 + w2 + b


# --------------------------------------------------------------------------
# Forward (jitted); returns the padded (Bp, Cp) log-softmax output.
# --------------------------------------------------------------------------
@jax.jit
def _forward_padded(x, w1p, b1p, w2p, b2p):
    B, D = x.shape
    Hp = w1p.shape[1]
    Cp = w2p.shape[1]

    TB = _pick_tb(B)
    Bp = _round_up(B, TB)
    if Bp != B:                           # row-only zero pad (rarely taken)
        x = jnp.pad(x, ((0, Bp - B), (0, 0)))

    est = _vmem_bytes_estimate(TB, D, Hp, Cp)
    vmem_limit = None
    # v5e's scoped-VMEM default is 16 MiB (v6e/v7x: 32 MiB); raise it
    # explicitly when needed so all generations can use the same large tile.
    if est > 16 * 1024 * 1024:
        vmem_limit = int(min(est + (4 << 20), 64 << 20))   # cap at v7x physical

    cost = pl.CostEstimate(
        flops=int(2 * Bp * (D * Hp + Hp * Cp)),
        transcendentals=int(Bp * Cp),
        bytes_accessed=int(x.size * x.dtype.itemsize
                           + w1p.size * 2 + w2p.size * 2
                           + b1p.size * 4 + b2p.size * 4 + Bp * Cp * 4),
    )

    return pl.pallas_call(
        _mlp_kernel,
        out_shape=jax.ShapeDtypeStruct((Bp, Cp), jnp.float32),
        grid=(Bp // TB,),
        in_specs=[
            # Activations: per batch tile, full-extent (unpadded) feature axis.
            pl.BlockSpec((TB, D), lambda i: (i, 0)),
            # Weights/biases: constant index_map -> VMEM-resident across the
            # batch grid; only activation/output DMAs stream per tile.
            pl.BlockSpec((D, Hp), lambda i: (0, 0)),
            pl.BlockSpec((1, Hp), lambda i: (0, 0)),
            pl.BlockSpec((Hp, Cp), lambda i: (0, 0)),
            pl.BlockSpec((1, Cp), lambda i: (0, 0)),
        ],
        out_specs=pl.BlockSpec((TB, Cp), lambda i: (i, 0)),
        compiler_params=pltpu.CompilerParams(
            dimension_semantics=("parallel",),        # megacore split on v7x
            vmem_limit_bytes=vmem_limit),
        cost_estimate=cost,
    )(x, w1p, b1p, w2p, b2p)


def mlp_classifier(x, prepared, y=None):
    """Mirrors MLPClassifier.forward (eval mode: dropout is identity)."""
    lp_pad = _forward_padded(x, prepared.w1p, prepared.b1p,
                             prepared.w2p, prepared.b2p)      # (Bp, Cp)
    B = x.shape[0]
    if y is not None:
        # Work directly on the padded kernel output: padded class columns are
        # ~-1e30 (never win argmax, ~0 probability); restrict to the first B
        # rows only when batch padding was added.
        lp = lp_pad if lp_pad.shape[0] == B else lp_pad[:B]
        loss = -jnp.mean(jnp.take_along_axis(lp, y[:, None], axis=1))
        pred = jnp.argmax(lp, axis=1)
        accu = jnp.mean((pred == y).astype(jnp.float32))
        return loss, accu, pred
    # TODO(synk): PyTorch returns None + a log warning here; we return the
    # log-softmax output (sliced back to the logical (B, C) shape) instead.
    C = prepared.num_class
    if lp_pad.shape == (B, C):
        return lp_pad
    return lp_pad[:B, :C]


def init_params(key, input_size, hidden_size, num_class):
    # Deterministic synthetic init (weights_init in the original normal-inits
    # the Linear weights); small values keep log_softmax well-behaved.
    k1, k2, k3, k4 = jax.random.split(key, 4)
    w1 = 0.05 * jax.random.normal(k1, (input_size, hidden_size), jnp.float32)
    b1 = 0.05 * jax.random.normal(k2, (1, hidden_size), jnp.float32)
    w2 = 0.05 * jax.random.normal(k3, (hidden_size, num_class), jnp.float32)
    b2 = 0.05 * jax.random.normal(k4, (1, num_class), jnp.float32)
    return w1, b1, w2, b2


if __name__ == "__main__":
    key = jax.random.PRNGKey(0)
    kx, ky, kp = jax.random.split(key, 3)

    batch, input_size, hidden_size, num_class = 8, 16, 32, 10
    x = jax.random.normal(kx, (batch, input_size), jnp.float32)
    y = jax.random.randint(ky, (batch,), 0, num_class, jnp.int32)
    w1, b1, w2, b2 = init_params(kp, input_size, hidden_size, num_class)

    prepared = prepare_params(w1, b1, w2, b2)   # pad/cast weights ONCE

    # Kernel path (no label): log_softmax logits.
    log_probs = mlp_classifier(x, prepared)
    log_probs = jax.block_until_ready(log_probs)
    assert log_probs.shape == (batch, num_class)

    # Label path: loss / accuracy / pred from the padded kernel output.
    loss, accu, pred = mlp_classifier(x, prepared, y)
    jax.block_until_ready((loss, accu, pred))
    assert pred.shape == (batch,)

    # Reference with the same bf16-matmul / f32-accumulate arithmetic.
    h1 = jnp.maximum(
        jnp.dot(x.astype(jnp.bfloat16), w1.astype(jnp.bfloat16),
                preferred_element_type=jnp.float32) + b1, 0.0)
    logits = jnp.dot(h1.astype(jnp.bfloat16), w2.astype(jnp.bfloat16),
                     preferred_element_type=jnp.float32) + b2
    ref = jax.nn.log_softmax(logits, axis=1)
    assert jnp.allclose(log_probs, ref, atol=2e-3, rtol=2e-3), "mismatch vs reference"

    ref_loss = -jnp.mean(jnp.take_along_axis(ref, y[:, None], axis=1))
    assert jnp.allclose(loss, ref_loss, atol=2e-3, rtol=2e-3), "loss mismatch"

    print("KERNEL_OK")
</pallas_src>

<mosaic_0001>
module attributes {stable_mosaic.version = 11 : i64} {
  func.func @_mlp_kernel(%arg0: i32, %arg1: memref<8x16xf32, #tpu.memory_space<vmem>>, %arg2: memref<16x128xbf16, #tpu.memory_space<vmem>>, %arg3: memref<1x128xf32, #tpu.memory_space<vmem>>, %arg4: memref<128x128xbf16, #tpu.memory_space<vmem>>, %arg5: memref<1x128xf32, #tpu.memory_space<vmem>>, %arg6: memref<8x128xf32, #tpu.memory_space<vmem>>) attributes {dimension_semantics = [#tpu.dimension_semantics<parallel>], iteration_bounds = array<i64: 1>, scalar_prefetch = 0 : i64, scratch_operands = 0 : i64, tpu.core_type = #tpu.core_type<tc>, window_params = [{transform_indices = @transform_0, window_bounds = array<i64: 8, 16>}, {pipeline_mode = #tpu.pipeline_mode<synchronous>, transform_indices = @transform_1, window_bounds = array<i64: 16, 128>}, {pipeline_mode = #tpu.pipeline_mode<synchronous>, transform_indices = @transform_2, window_bounds = array<i64: 1, 128>}, {pipeline_mode = #tpu.pipeline_mode<synchronous>, transform_indices = @transform_3, window_bounds = array<i64: 128, 128>}, {pipeline_mode = #tpu.pipeline_mode<synchronous>, transform_indices = @transform_4, window_bounds = array<i64: 1, 128>}, {transform_indices = @transform_5, window_bounds = array<i64: 8, 128>}]} {
    %c0 = arith.constant 0 : index
    %c0_0 = arith.constant 0 : index
    %0 = vector.load %arg1[%c0, %c0_0] : memref<8x16xf32, #tpu.memory_space<vmem>>, vector<8x16xf32>
    %1 = arith.truncf %0 : vector<8x16xf32> to vector<8x16xbf16>
    %c0_1 = arith.constant 0 : index
    %c0_2 = arith.constant 0 : index
    %2 = vector.load %arg2[%c0_1, %c0_2] : memref<16x128xbf16, #tpu.memory_space<vmem>>, vector<16x128xbf16>
    %cst = arith.constant dense<0.000000e+00> : vector<8x128xf32>
    %3 = tpu.matmul %1, %2, %cst {dimension_numbers = #tpu.dot_dimension_numbers<[1], [0], [0], [1], [0, 0, 1, 1], [], []>} : vector<8x16xbf16>, vector<16x128xbf16>, vector<8x128xf32> -> vector<8x128xf32>
    %c0_3 = arith.constant 0 : index
    %c0_4 = arith.constant 0 : index
    %4 = vector.load %arg3[%c0_3, %c0_4] : memref<1x128xf32, #tpu.memory_space<vmem>>, vector<1x128xf32>
    %5 = vector.broadcast %4 : vector<1x128xf32> to vector<8x128xf32>
    %6 = arith.addf %3, %5 : vector<8x128xf32>
    %cst_5 = arith.constant 0.000000e+00 : f32
    %7 = vector.broadcast %cst_5 : f32 to vector<8x128xf32>
    %8 = arith.maximumf %6, %7 : vector<8x128xf32>
    %9 = arith.truncf %8 : vector<8x128xf32> to vector<8x128xbf16>
    %c0_6 = arith.constant 0 : index
    %c0_7 = arith.constant 0 : index
    %10 = vector.load %arg4[%c0_6, %c0_7] : memref<128x128xbf16, #tpu.memory_space<vmem>>, vector<128x128xbf16>
    %cst_8 = arith.constant dense<0.000000e+00> : vector<8x128xf32>
    %11 = tpu.matmul %9, %10, %cst_8 {dimension_numbers = #tpu.dot_dimension_numbers<[1], [0], [0], [1], [0, 0, 1, 1], [], []>} : vector<8x128xbf16>, vector<128x128xbf16>, vector<8x128xf32> -> vector<8x128xf32>
    %c0_9 = arith.constant 0 : index
    %c0_10 = arith.constant 0 : index
    %12 = vector.load %arg5[%c0_9, %c0_10] : memref<1x128xf32, #tpu.memory_space<vmem>>, vector<1x128xf32>
    %13 = vector.broadcast %12 : vector<1x128xf32> to vector<8x128xf32>
    %14 = arith.addf %11, %13 : vector<8x128xf32>
    %cst_11 = arith.constant dense<0xFF800000> : vector<8xf32>
    %15 = vector.multi_reduction <maximumf>, %14, %cst_11 [1] : vector<8x128xf32> to vector<8xf32>
    %16 = vector.shape_cast %15 : vector<8xf32> to vector<8x1xf32>
    %17 = vector.broadcast %16 : vector<8x1xf32> to vector<8x128xf32>
    %18 = arith.subf %14, %17 : vector<8x128xf32>
    %19 = math.exp %18 : vector<8x128xf32>
    %cst_12 = arith.constant dense<0.000000e+00> : vector<8xf32>
    %20 = vector.multi_reduction <add>, %19, %cst_12 [1] : vector<8x128xf32> to vector<8xf32>
    %21 = vector.shape_cast %20 : vector<8xf32> to vector<8x1xf32>
    %22 = math.log %21 : vector<8x1xf32>
    %23 = vector.broadcast %22 : vector<8x1xf32> to vector<8x128xf32>
    %24 = arith.subf %18, %23 : vector<8x128xf32>
    %c0_13 = arith.constant 0 : index
    %c0_14 = arith.constant 0 : index
    %25 = vector.load %arg6[%c0_13, %c0_14] : memref<8x128xf32, #tpu.memory_space<vmem>>, vector<8x128xf32>
    tpu.vector_store %arg6[%c0_13, %c0_14], %24 {strides = array<i32>} : memref<8x128xf32, #tpu.memory_space<vmem>>, vector<8x128xf32>,
    return
  }
  func.func @transform_0(%arg0: i32) -> (i32, i32) {
    %c0_i32 = arith.constant 0 : i32
    %c0_i32_0 = arith.constant 0 : i32
    return %arg0, %c0_i32 : i32, i32
  }
  func.func @transform_1(%arg0: i32) -> (i32, i32) {
    %c0_i32 = arith.constant 0 : i32
    %c0_i32_0 = arith.constant 0 : i32
    %c0_i32_1 = arith.constant 0 : i32
    return %c0_i32, %c0_i32_0 : i32, i32
  }
  func.func @transform_2(%arg0: i32) -> (i32, i32) {
    %c0_i32 = arith.constant 0 : i32
    %c0_i32_0 = arith.constant 0 : i32
    %c0_i32_1 = arith.constant 0 : i32
    return %c0_i32, %c0_i32_0 : i32, i32
  }
  func.func @transform_3(%arg0: i32) -> (i32, i32) {
    %c0_i32 = arith.constant 0 : i32
    %c0_i32_0 = arith.constant 0 : i32
    %c0_i32_1 = arith.constant 0 : i32
    return %c0_i32, %c0_i32_0 : i32, i32
  }
  func.func @transform_4(%arg0: i32) -> (i32, i32) {
    %c0_i32 = arith.constant 0 : i32
    %c0_i32_0 = arith.constant 0 : i32
    %c0_i32_1 = arith.constant 0 : i32
    return %c0_i32, %c0_i32_0 : i32, i32
  }
  func.func @transform_5(%arg0: i32) -> (i32, i32) {
    %c0_i32 = arith.constant 0 : i32
    %c0_i32_0 = arith.constant 0 : i32
    return %arg0, %c0_i32 : i32, i32
  }
}

</mosaic_0001>

<llo_original>
// kernel: _forward_padded.1
$region0: #{_forward_padded.1}
  #allocation0 [shape = 'u32[]', space=smem, size = 0x4, offset = 0x4, fixed_abs, tag = 'smem constant byte address 0x4 - core index']
  #allocation1 [shape = 'u32[72,128]{1,0:T(1,128)}', space=vmem, size = 0x9000, scoped, tag = 'internal scratch']
  %s0 = inlined_call_operand.hbm [shape: f32[8,16], index: 0, kind: input, shape index: {}]
  %s1 = inlined_call_operand.hbm [shape: bf16[16,128], index: 1, kind: input, shape index: {}]
  %s2 = inlined_call_operand.vmem [shape: f32[1,128], index: 2, kind: input, shape index: {}]
  %s3 = inlined_call_operand.hbm [shape: bf16[128,128], index: 3, kind: input, shape index: {}]
  %s4 = inlined_call_operand.vmem [shape: f32[1,128], index: 4, kind: input, shape index: {}]
  %s5 = inlined_call_operand.hbm [shape: f32[8,128], index: 5, kind: output, shape index: {}]
  %s6 = sld [smem:[#allocation0]]
  $region42: #{_forward_padded.1} parent=0
    _
  %s8 = ssub.s32 1, %s6
  %s9 = scalar_select 0, %s8, %s6
  $region1: #{_forward_padded.1} parent=0
    #allocation2 [shape = 'u8[4096]{0}', space=vmem, size = 0x1000, scoped, tag = 'input window, operand 0, single buffered']
    #allocation3 [shape = 's32[1]{0}', space=sflag, size = 0x4, scoped, tag = 'scoped memory for _forward_padded.1']
    #allocation4 [shape = 's32[1]{0}', space=sflag, size = 0x4, scoped, tag = 'scoped memory for _forward_padded.1']
    #allocation5 [shape = 'u8[4096]{0}', space=vmem, size = 0x1000, scoped, tag = 'input window, operand 1, single buffered']
    #allocation6 [shape = 's32[1]{0}', space=sflag, size = 0x4, scoped, tag = 'scoped memory for _forward_padded.1']
    #allocation7 [shape = 'u8[32768]{0}', space=vmem, size = 0x8000, scoped, tag = 'input window, operand 3, single buffered']
    #allocation8 [shape = 'u8[4096]{0}', space=vmem, size = 0x1000, scoped, tag = 'output window, operand 0, single buffered']
    %10 = vsyncpa [#allocation3], 0
    %11 = vsyncpa [#allocation6], 0
    %12 = vsyncpa [#allocation4], 0
    // Predicated region
    $region2: #{_forward_padded.1} parent=1 // pred_check
      _
    $region3: #{_forward_padded.1} parent=1 // pred_check_branch
      %14 = sbr.rel (0) target = $region5
    $region4: #{_forward_padded.1} parent=1 // pred_region
      %16 = vsyncadd [#allocation3], 0
      %s18 = sshll.u32 %s0, 4
      %s19 = int_to_ptr.hbm [resolvable:$true] %s18
      %s20 = sshll.u32 [#allocation2], 4
      %s21 = int_to_ptr.vmem [resolvable:$true] %s20
      %23 = dma.hbm_to_vmem [thread:$0]  %s19, 128, %s21, [#allocation3]
    $region5: #{_forward_padded.1} parent=1 // pred_fallthru
      _
    // Predicated region
    $region6: #{_forward_padded.1} parent=1 // pred_check
      _
    $region7: #{_forward_padded.1} parent=1 // pred_check_branch
      %25 = sbr.rel (0) target = $region9
    $region8: #{_forward_padded.1} parent=1 // pred_region
      %27 = vsyncadd [#allocation6], 0
      %s28 = sshll.u32 %s1, 4
      %s29 = int_to_ptr.hbm [resolvable:$true] %s28
      %s30 = sshll.u32 [#allocation5], 4
      %s31 = int_to_ptr.vmem [resolvable:$true] %s30
      %36 = dma.hbm_to_vmem [thread:$0]  %s29, 128, %s31, [#allocation6], 64, 64, 4
    $region9: #{_forward_padded.1} parent=1 // pred_fallthru
      _
    // Predicated region
    $region10: #{_forward_padded.1} parent=1 // pred_check
      _
    $region11: #{_forward_padded.1} parent=1 // pred_check_branch
      %38 = sbr.rel (0) target = $region13
    $region12: #{_forward_padded.1} parent=1 // pred_region
      _
    $region13: #{_forward_padded.1} parent=1 // pred_fallthru
      _
    // Predicated region
    $region14: #{_forward_padded.1} parent=1 // pred_check
      _
    $region15: #{_forward_padded.1} parent=1 // pred_check_branch
      %40 = sbr.rel (0) target = $region17
    $region16: #{_forward_padded.1} parent=1 // pred_region
      %42 = vsyncadd [#allocation6], 0
      %s43 = sshll.u32 %s3, 4
      %s44 = int_to_ptr.hbm [resolvable:$true] %s43
      %s45 = sshll.u32 [#allocation7], 4
      %s46 = int_to_ptr.vmem [resolvable:$true] %s45
      %51 = dma.hbm_to_vmem [thread:$0]  %s44, 1024, %s46, [#allocation6], 64, 64, 4
    $region17: #{_forward_padded.1} parent=1 // pred_fallthru
      _
    // Predicated region
    $region18: #{_forward_padded.1} parent=1 // pred_check
      _
    $region19: #{_forward_padded.1} parent=1 // pred_check_branch
      %53 = sbr.rel (0) target = $region21
    $region20: #{_forward_padded.1} parent=1 // pred_region
      _
    $region21: #{_forward_padded.1} parent=1 // pred_fallthru
      _
    // Predicated region
    $region22: #{_forward_padded.1} parent=1 // pred_check
      _
    $region23: #{_forward_padded.1} parent=1 // pred_check_branch
      %55 = sbr.rel (0) target = $region25
    $region24: #{_forward_padded.1} parent=1 // pred_region
      %57 = dma.done [#allocation3], 128
    $region25: #{_forward_padded.1} parent=1 // pred_fallthru
      _
    // Predicated region
    $region26: #{_forward_padded.1} parent=1 // pred_check
      _
    $region27: #{_forward_padded.1} parent=1 // pred_check_branch
      %59 = sbr.rel (0) target = $region29
    $region28: #{_forward_padded.1} parent=1 // pred_region
      %61 = dma.done [#allocation6], 128
    $region29: #{_forward_padded.1} parent=1 // pred_fallthru
      _
    // Predicated region
    $region30: #{_forward_padded.1} parent=1 // pred_check
      _
    $region31: #{_forward_padded.1} parent=1 // pred_check_branch
      %63 = sbr.rel (0) target = $region33
    $region32: #{_forward_padded.1} parent=1 // pred_region
      %65 = dma.done [#allocation6], 1024
    $region33: #{_forward_padded.1} parent=1 // pred_fallthru
      _
    %v67 = vld [vmem:[#allocation2] sm:$0xff]
    %v68 = vpack.c.bf16 %v67, %v67
    %v69 = vld [vmem:[#allocation5] sm:$0xf]
    %v70 = vld [vmem:[#allocation5 + $0x4] sm:$0xf]
    %v71 = vld [vmem:[%s2] sm:$0x1]
    %v73 = vperm.slane %v71, 0
    %v77 = vunpack.c.l.b16 %v69
    %v78 = vunpack.c.l.b16 %v70
    %v79 = vpack.c.b16 %v78, %v77
    %vm81 = vcmask 130048
    %v83 = vsel %vm81, %v68, 0
    %85 = vmatpush.bf16.msra.mxu0 0
    %86 = vmatpush.bf16.msra.mxu0 0
    %87 = vmatpush.bf16.msra.mxu0 0
    %88 = vmatpush.bf16.msra.mxu0 0
    %89 = vmatpush.bf16.msra.mxu0 0
    %90 = vmatpush.bf16.msra.mxu0 0
    %91 = vmatpush.bf16.msra.mxu0 0
    %92 = vmatpush.bf16.msra.mxu0 %v79
    %93 = vmatmul.bf16.gmra.mxu0 %v83
    %v94 = vpop.f32.mrf.mxu0
    %v95 = vadd.f32 %v73, %v94
    %v96 = vpop.f32.mrf.mxu0
    %97 = vdwg.mxu0
    %v98 = vmax.f32 %v95, 0.0
    %v99 = vpack.c.bf16 %v98, %v98
    %v100 = vld [vmem:[#allocation7] sm:$0xf]
    %v101 = vld [vmem:[#allocation7 + $0x4] sm:$0xf]
    %v102 = vld [vmem:[#allocation7 + $0x8] sm:$0xf]
    %v103 = vld [vmem:[#allocation7 + $0xc] sm:$0xf]
    %v104 = vld [vmem:[#allocation7 + $0x10] sm:$0xf]
    %v105 = vld [vmem:[#allocation7 + $0x14] sm:$0xf]
    %v106 = vld [vmem:[#allocation7 + $0x18] sm:$0xf]
    %v107 = vld [vmem:[#allocation7 + $0x1c] sm:$0xf]
    %v108 = vld [vmem:[#allocation7 + $0x20] sm:$0xf]
    %v109 = vld [vmem:[#allocation7 + $0x24] sm:$0xf]
    %v110 = vld [vmem:[#allocation7 + $0x28] sm:$0xf]
    %v111 = vld [vmem:[#allocation7 + $0x2c] sm:$0xf]
    %v112 = vld [vmem:[#allocation7 + $0x30] sm:$0xf]
    %v113 = vld [vmem:[#allocation7 + $0x34] sm:$0xf]
    %v114 = vld [vmem:[#allocation7 + $0x38] sm:$0xf]
    %v115 = vld [vmem:[#allocation7 + $0x3c] sm:$0xf]
    %v116 = vld [vmem:[%s4] sm:$0x1]
    %v118 = vperm.slane %v116, 0
    %v136 = vunpack.c.l.b16 %v100
    %v137 = vunpack.c.l.b16 %v101
    %v138 = vunpack.c.l.b16 %v102
    %v139 = vunpack.c.l.b16 %v103
    %v140 = vunpack.c.l.b16 %v104
    %v141 = vunpack.c.l.b16 %v105
    %v142 = vunpack.c.l.b16 %v106
    %v143 = vunpack.c.l.b16 %v107
    %v144 = vunpack.c.l.b16 %v108
    %v145 = vunpack.c.l.b16 %v109
    %v146 = vunpack.c.l.b16 %v110
    %v147 = vunpack.c.l.b16 %v111
    %v148 = vunpack.c.l.b16 %v112
    %v149 = vunpack.c.l.b16 %v113
    %v150 = vunpack.c.l.b16 %v114
    %v151 = vunpack.c.l.b16 %v115
    %v152 = vpack.c.b16 %v137, %v136
    %v153 = vpack.c.b16 %v139, %v138
    %v154 = vpack.c.b16 %v141, %v140
    %v155 = vpack.c.b16 %v143, %v142
    %v156 = vpack.c.b16 %v145, %v144
    %v157 = vpack.c.b16 %v147, %v146
    %v158 = vpack.c.b16 %v149, %v148
    %v159 = vpack.c.b16 %v151, %v150
    %168 = vmatpush.bf16.msra.mxu0 %v159
    %169 = vmatpush.bf16.msra.mxu0 %v158
    %170 = vmatpush.bf16.msra.mxu0 %v157
    %171 = vmatpush.bf16.msra.mxu0 %v156
    %172 = vmatpush.bf16.msra.mxu0 %v155
    %173 = vmatpush.bf16.msra.mxu0 %v154
    %174 = vmatpush.bf16.msra.mxu0 %v153
    %175 = vmatpush.bf16.msra.mxu0 %v152
    %176 = vmatmul.bf16.gmra.mxu0 %v99
    %v177 = vpop.f32.mrf.mxu0
    %v178 = vadd.f32 %v118, %v177
    %v179 = vpop.f32.mrf.mxu0
    %180 = vdwg.mxu0
    %181 = vmax.xlane.f32.xlu0 %v178
    %v182 = vpop.xlane.xlu0 %181
    %v183 = vsub.f32 %v178, %v182
    %v184 = vmul.f32 %v183, 1.442695
    %v185 = vpow.pop %v184
    %186 = vadd.xlane.f32.xlu0 %v185
    %v187 = vpop.xlane.xlu0 %186
    %v188 = vlog2.pop %v187
    %v189 = vmul.f32 %v188, 0.6931472
    %v190 = vsub.f32 %v183, %v189
    %191 = vst [vmem:[#allocation8] sm:$0xff] %v190
    // Predicated region
    $region34: #{_forward_padded.1} parent=1 // pred_check
      _
    $region35: #{_forward_padded.1} parent=1 // pred_check_branch
      %193 = sbr.rel (0) target = $region37
    $region36: #{_forward_padded.1} parent=1 // pred_region
      %195 = vsyncadd [#allocation4], 0
      %s197 = sshll.u32 [#allocation8], 4
      %s198 = int_to_ptr.vmem [resolvable:$true] %s197
      %s199 = sshll.u32 %s5, 4
      %s200 = int_to_ptr.hbm [resolvable:$true] %s199
      %202 = dma.vmem_to_hbm [thread:$0]  %s198, 128, %s200, [#allocation4]
    $region37: #{_forward_padded.1} parent=1 // pred_fallthru
      _
    // Predicated region
    $region38: #{_forward_padded.1} parent=1 // pred_check
      _
    $region39: #{_forward_padded.1} parent=1 // pred_check_branch
      %204 = sbr.rel (0) target = $region41
    $region40: #{_forward_padded.1} parent=1 // pred_region
      %206 = dma.done [#allocation4], 128
    $region41: #{_forward_padded.1} parent=1 // pred_fallthru
      _
    %207 = vsyncpa [#allocation3], 1
    %208 = vsyncpa [#allocation6], 1
    %209 = vsyncpa [#allocation4], 1

</llo_original>
